<compile_context>
chip_gen: v7x
topology: tpu7x:2x2x1
jax: 0.10.0
libtpu: 0.0.40
codegen_flags: <defaults>
</compile_context>

<pallas_src>
import functools

import jax
import jax.numpy as jnp
from jax.experimental import pallas as pl
from jax.experimental.pallas import tpu as pltpu

EPS = 1e-5  # nn.LayerNorm default
_MIB = 1024 * 1024


def _round_up(x, m):
    return ((x + m - 1) // m) * m


# --------------------------------------------------------------------------
# Kernel
# --------------------------------------------------------------------------
def _tds_fc_kernel(x_ref, w1t_ref, w2t_ref, vec_ref, o_ref, *, f_true):
    """One row tile of: LayerNorm(Linear(ReLU(Linear(x))) + x).

    x_ref:   (TR, Fp)  input rows (f32; ragged tail rows may hold garbage)
    w1t_ref: (Fp, Fp)  first Linear weight, pre-transposed (in, out), MXU dtype
    w2t_ref: (Fp, Fp)  second Linear weight, pre-transposed, MXU dtype
    vec_ref: (4, Fp)   packed f32 rows [b1; b2; gamma; beta]
    o_ref:   (TR, Fp)
    f_true:  true feature count (<= Fp); pad lanes are zero in all operands.
    """
    f_padded = x_ref.shape[-1]
    x = x_ref[...].astype(jnp.float32)
    cdt = w1t_ref.dtype  # MXU compute dtype (bf16 by default); f32 accumulation.

    v = vec_ref[...]
    b1, b2, gamma, beta = v[0:1, :], v[1:2, :], v[2:3, :], v[3:4, :]

    # fc_block: Linear -> ReLU -> Linear (MXU, f32 accumulation).
    h = jnp.dot(x.astype(cdt), w1t_ref[...], preferred_element_type=jnp.float32) + b1
    h = jnp.maximum(h, 0.0)
    y = jnp.dot(h.astype(cdt), w2t_ref[...], preferred_element_type=jnp.float32) + b2

    # Residual connection (f32).
    y = y + x

    # LayerNorm over the feature (lane) axis — centered two-pass variance.
    inv_f = jnp.float32(1.0 / f_true)
    mean = jnp.sum(y, axis=-1, keepdims=True) * inv_f
    centered = y - mean
    if f_padded != f_true:
        # Pad lanes carry (0 - mean); mask them out of the variance.
        lane = jax.lax.broadcasted_iota(jnp.int32, y.shape, 1)
        centered = jnp.where(lane < f_true, centered, 0.0)
    var = jnp.sum(centered * centered, axis=-1, keepdims=True) * inv_f
    inv = jax.lax.rsqrt(var + jnp.float32(EPS))
    o_ref[...] = (centered * inv * gamma + beta).astype(o_ref.dtype)


# --------------------------------------------------------------------------
# Parameter baking (hoisted out of the per-call path)
# --------------------------------------------------------------------------
def prepare_params(w1, b1, w2, b2, gamma, beta, *, compute_dtype=jnp.bfloat16):
    """Bake torch-convention (out, in) weights into kernel operands, once.

    Returns (w1t, w2t, vecs): pre-transposed (in, out) weights in the MXU
    compute dtype with the feature axis zero-padded to a multiple of 128
    lanes, plus a packed (4, Fp) f32 operand holding [b1; b2; gamma; beta].
    """
    f = int(w1.shape[0])
    fp = _round_up(f, 128)

    def pad_w(w):
        wt = jnp.asarray(w).T.astype(compute_dtype)
        if fp == f:
            return wt
        return jnp.zeros((fp, fp), compute_dtype).at[:f, :f].set(wt)

    w1t, w2t = pad_w(w1), pad_w(w2)
    vecs = jnp.zeros((4, fp), jnp.float32)
    vecs = (vecs.at[0, :f].set(jnp.asarray(b1, jnp.float32))
                 .at[1, :f].set(jnp.asarray(b2, jnp.float32))
                 .at[2, :f].set(jnp.asarray(gamma, jnp.float32))
                 .at[3, :f].set(jnp.asarray(beta, jnp.float32)))
    return w1t, w2t, vecs


# --------------------------------------------------------------------------
# Tiling / VMEM heuristics (all trace-time Python)
# --------------------------------------------------------------------------
def _vmem_capacity_bytes():
    try:
        cap = int(getattr(pltpu.get_tpu_info(), "vmem_capacity_bytes", 0))
        if cap > 0:
            return cap
    except Exception:
        pass
    return 64 * _MIB  # conservative lower bound (v7x per-TensorCore)


def _choose_tile_rows(rows, f_padded, non_row_vmem_bytes, vmem_budget, tile_rows):
    explicit = tile_rows is not None
    if explicit:
        tr = max(8, (int(tile_rows) // 8) * 8)
    else:
        # Target ~2 MiB f32 input blocks, clamped to [256, 2048] rows.
        tr = max(256, min(2048, (2 * _MIB) // (4 * f_padded)))
        tr = max(8, (tr // 8) * 8)
    tr = min(tr, _round_up(rows, 8))
    # Keep at least two grid steps when rows allow, so both v7x TensorCores
    # get work from the "parallel" row axis.
    if not explicit and rows > 8 and pl.cdiv(rows, tr) < 2:
        tr = max(8, _round_up(pl.cdiv(rows, 2), 8))
    # Clamp so double-buffered input + output row blocks fit next to the
    # resident weights within the VMEM budget (with ~2 MiB headroom).
    avail = vmem_budget - non_row_vmem_bytes - 2 * _MIB
    if avail > 0:
        max_tr = max(8, ((avail // (16 * f_padded)) // 8) * 8)
        tr = min(tr, max_tr)
    return tr


def _weight_spec(fp, single_buffer):
    """Full-(Fp,Fp) resident weight block; single-buffered when requested."""
    if single_buffer:
        # Constant index_map -> the block never changes; one buffer suffices,
        # halving resident weight VMEM (matters most on v7x's 64 MiB).
        return pl.BlockSpec((fp, fp), lambda i: (0, 0), pipeline_mode=pl.Buffered(1))
    return pl.BlockSpec((fp, fp), lambda i: (0, 0))


# --------------------------------------------------------------------------
# pallas_call wrapper
# --------------------------------------------------------------------------
@functools.partial(jax.jit,
                   static_argnames=("single_buffer_weights", "tile_rows", "out_dtype"))
def _tds_fc_apply_impl(x, w1t, w2t, vecs, *, single_buffer_weights=True,
                       tile_rows=None, out_dtype=None):
    t, n, f = x.shape
    fp = w1t.shape[0]
    rows = t * n
    out_dtype = x.dtype if out_dtype is None else out_dtype

    x2 = x.reshape(rows, f)
    if fp != f:
        # TODO(synk): for a full TDS stack, keep activations padded to fp
        # between blocks so this per-block column pad/slice HBM pass vanishes.
        x2 = jnp.pad(x2, ((0, 0), (0, fp - f)))

    wbytes = jnp.dtype(w1t.dtype).itemsize
    n_w_bufs = 1 if single_buffer_weights else 2
    non_row_vmem = n_w_bufs * 2 * fp * fp * wbytes + 2 * 4 * fp * 4

    cap = _vmem_capacity_bytes()
    vmem_budget = max(32 * _MIB, cap - 8 * _MIB)
    # TODO(synk): once the resident bf16 weights (4*F^2 bytes) alone exceed the
    # budget (F >~ 2.5-3.5k on v7x), add a K grid axis streaming (tk, fp)
    # weight slabs into an f32 VMEM accumulator instead of keeping them whole.

    tr = _choose_tile_rows(rows, fp, non_row_vmem, vmem_budget, tile_rows)
    grid = (pl.cdiv(rows, tr),)

    row_spec = pl.BlockSpec((tr, fp), lambda i: (i, 0))
    w_spec = _weight_spec(fp, single_buffer_weights)
    vec_spec = pl.BlockSpec((4, fp), lambda i: (0, 0))

    cost = pl.CostEstimate(
        flops=int(4 * rows * fp * fp),      # two (rows x fp x fp) matmuls
        transcendentals=int(rows),          # one rsqrt per row
        bytes_accessed=int(2 * rows * fp * 4 + 2 * fp * fp * wbytes + 4 * fp * 4),
    )

    out2 = pl.pallas_call(
        functools.partial(_tds_fc_kernel, f_true=f),
        out_shape=jax.ShapeDtypeStruct((rows, fp), out_dtype),
        grid_spec=pltpu.PrefetchScalarGridSpec(
            num_scalar_prefetch=0,
            grid=grid,
            in_specs=[row_spec, w_spec, w_spec, vec_spec],
            out_specs=row_spec,
        ),
        compiler_params=pltpu.CompilerParams(
            dimension_semantics=("parallel",),
            vmem_limit_bytes=int(vmem_budget),
        ),
        cost_estimate=cost,
    )(x2, w1t, w2t, vecs)

    if fp != f:
        out2 = out2[:, :f]
    return out2.reshape(t, n, f)


_SINGLE_BUFFER_OK = True  # flipped once if this jax/libtpu rejects pl.Buffered(1)


def tds_fc_apply(x, w1t, w2t, vecs, *, tile_rows=None, out_dtype=None):
    """Apply the TDS FC block to x:(T, N, F) using prepare_params() outputs."""
    global _SINGLE_BUFFER_OK
    if _SINGLE_BUFFER_OK:
        try:
            return _tds_fc_apply_impl(x, w1t, w2t, vecs, single_buffer_weights=True,
                                      tile_rows=tile_rows, out_dtype=out_dtype)
        except Exception:
            _SINGLE_BUFFER_OK = False  # fall back to double-buffered weights
    return _tds_fc_apply_impl(x, w1t, w2t, vecs, single_buffer_weights=False,
                              tile_rows=tile_rows, out_dtype=out_dtype)


def tds_fc_block(x, w1, b1, w2, b2, gamma, beta, *, compute_dtype=jnp.bfloat16,
                 tile_rows=None, out_dtype=None):
    """One-shot convenience. For repeated calls, call prepare_params() once and
    reuse its outputs with tds_fc_apply()."""
    return tds_fc_apply(
        x, *prepare_params(w1, b1, w2, b2, gamma, beta, compute_dtype=compute_dtype),
        tile_rows=tile_rows, out_dtype=out_dtype)


# --------------------------------------------------------------------------
# Reference + init + self-test
# --------------------------------------------------------------------------
def init_params(key, num_features):
    """Deterministic init matching nn.Linear / nn.LayerNorm default shapes."""
    k1, k2, k3, k4 = jax.random.split(key, 4)
    bound = 1.0 / jnp.sqrt(num_features)
    w1 = jax.random.uniform(k1, (num_features, num_features), jnp.float32, -bound, bound)
    b1 = jax.random.uniform(k2, (num_features,), jnp.float32, -bound, bound)
    w2 = jax.random.uniform(k3, (num_features, num_features), jnp.float32, -bound, bound)
    b2 = jax.random.uniform(k4, (num_features,), jnp.float32, -bound, bound)
    gamma = jnp.ones((num_features,), jnp.float32)
    beta = jnp.zeros((num_features,), jnp.float32)
    return w1, b1, w2, b2, gamma, beta


def _reference(x, w1, b1, w2, b2, gamma, beta):
    """Pure-JAX reference mirroring the PyTorch forward."""
    h = jnp.maximum(x @ w1.T + b1, 0.0)
    y = h @ w2.T + b2 + x
    mean = jnp.mean(y, axis=-1, keepdims=True)
    var = jnp.mean((y - mean) ** 2, axis=-1, keepdims=True)
    return (y - mean) / jnp.sqrt(var + EPS) * gamma + beta


if __name__ == "__main__":
    key = jax.random.PRNGKey(0)
    kx1, kx2, kx3, kp, kp2 = jax.random.split(key, 5)

    # --- F = 128 (lane-aligned), small (T, N) shapes --------------------------
    F = 128
    raw = init_params(kp, F)
    x = jax.random.normal(kx1, (8, 2, F), jnp.float32)       # rows = 16
    x_odd = jax.random.normal(kx2, (9, 3, F), jnp.float32)   # rows = 27 -> ragged last block

    ref = _reference(x, *raw)
    ref_odd = _reference(x_odd, *raw)

    # f32 MXU path: tight check against the pure-JAX reference.
    p_f32 = prepare_params(*raw, compute_dtype=jnp.float32)
    out_f32 = jax.block_until_ready(tds_fc_apply(x, *p_f32))
    assert out_f32.shape == x.shape
    assert jnp.allclose(out_f32, ref, atol=1e-4, rtol=1e-4), "f32 path mismatch"

    # bf16 MXU production path (prepare once, apply many; f32 accumulation).
    p_bf16 = prepare_params(*raw)
    out_bf16 = jax.block_until_ready(tds_fc_apply(x, *p_bf16))
    assert jnp.allclose(out_bf16, ref, atol=3e-2, rtol=3e-2), "bf16 path mismatch"

    # Non-tile-multiple row count exercises the ragged (masked) last block.
    out_odd = jax.block_until_ready(tds_fc_apply(x_odd, *p_bf16))
    assert out_odd.shape == x_odd.shape
    assert jnp.allclose(out_odd, ref_odd, atol=3e-2, rtol=3e-2), "ragged-row path mismatch"

    # --- F = 96 (not lane-aligned): feature pad + LN lane-mask path -----------
    F2 = 96
    raw2 = init_params(kp2, F2)
    x_na = jax.random.normal(kx3, (5, 3, F2), jnp.float32)    # rows = 15
    out_na = jax.block_until_ready(tds_fc_apply(x_na, *prepare_params(*raw2)))
    ref_na = _reference(x_na, *raw2)
    assert out_na.shape == x_na.shape
    assert jnp.allclose(out_na, ref_na, atol=3e-2, rtol=3e-2), "unaligned-F path mismatch"

    print("KERNEL_OK")
</pallas_src>

<mosaic_0001>
module attributes {stable_mosaic.version = 11 : i64} {
  func.func @_tds_fc_kernel(%arg0: i32, %arg1: memref<8x128xf32, #tpu.memory_space<vmem>>, %arg2: memref<128x128xf32, #tpu.memory_space<vmem>>, %arg3: memref<128x128xf32, #tpu.memory_space<vmem>>, %arg4: memref<4x128xf32, #tpu.memory_space<vmem>>, %arg5: memref<8x128xf32, #tpu.memory_space<vmem>>) attributes {dimension_semantics = [#tpu.dimension_semantics<parallel>], iteration_bounds = array<i64: 2>, scalar_prefetch = 0 : i64, scratch_operands = 0 : i64, tpu.core_type = #tpu.core_type<tc>, window_params = [{transform_indices = @transform_0, window_bounds = array<i64: 8, 128>}, {pipeline_mode = #tpu.pipeline_mode<synchronous>, transform_indices = @transform_1, window_bounds = array<i64: 128, 128>}, {pipeline_mode = #tpu.pipeline_mode<synchronous>, transform_indices = @transform_2, window_bounds = array<i64: 128, 128>}, {pipeline_mode = #tpu.pipeline_mode<synchronous>, transform_indices = @transform_3, window_bounds = array<i64: 4, 128>}, {transform_indices = @transform_4, window_bounds = array<i64: 8, 128>}]} {
    %c0 = arith.constant 0 : index
    %c0_0 = arith.constant 0 : index
    %0 = vector.load %arg1[%c0, %c0_0] : memref<8x128xf32, #tpu.memory_space<vmem>>, vector<8x128xf32>
    %c0_1 = arith.constant 0 : index
    %c0_2 = arith.constant 0 : index
    %1 = vector.load %arg4[%c0_1, %c0_2] : memref<4x128xf32, #tpu.memory_space<vmem>>, vector<4x128xf32>
    %2 = vector.extract_strided_slice %1 {offsets = [0, 0], sizes = [1, 128], strides = [1, 1]} : vector<4x128xf32> to vector<1x128xf32>
    %3 = vector.extract_strided_slice %1 {offsets = [1, 0], sizes = [1, 128], strides = [1, 1]} : vector<4x128xf32> to vector<1x128xf32>
    %4 = vector.extract_strided_slice %1 {offsets = [2, 0], sizes = [1, 128], strides = [1, 1]} : vector<4x128xf32> to vector<1x128xf32>
    %5 = vector.extract_strided_slice %1 {offsets = [3, 0], sizes = [1, 128], strides = [1, 1]} : vector<4x128xf32> to vector<1x128xf32>
    %c0_3 = arith.constant 0 : index
    %c0_4 = arith.constant 0 : index
    %6 = vector.load %arg2[%c0_3, %c0_4] : memref<128x128xf32, #tpu.memory_space<vmem>>, vector<128x128xf32>
    %cst = arith.constant dense<0.000000e+00> : vector<8x128xf32>
    %7 = tpu.matmul %0, %6, %cst {dimension_numbers = #tpu.dot_dimension_numbers<[1], [0], [0], [1], [0, 0, 1, 1], [], []>} : vector<8x128xf32>, vector<128x128xf32>, vector<8x128xf32> -> vector<8x128xf32>
    %8 = vector.broadcast %2 : vector<1x128xf32> to vector<8x128xf32>
    %9 = arith.addf %7, %8 : vector<8x128xf32>
    %cst_5 = arith.constant 0.000000e+00 : f32
    %10 = vector.broadcast %cst_5 : f32 to vector<8x128xf32>
    %11 = arith.maximumf %9, %10 : vector<8x128xf32>
    %c0_6 = arith.constant 0 : index
    %c0_7 = arith.constant 0 : index
    %12 = vector.load %arg3[%c0_6, %c0_7] : memref<128x128xf32, #tpu.memory_space<vmem>>, vector<128x128xf32>
    %cst_8 = arith.constant dense<0.000000e+00> : vector<8x128xf32>
    %13 = tpu.matmul %11, %12, %cst_8 {dimension_numbers = #tpu.dot_dimension_numbers<[1], [0], [0], [1], [0, 0, 1, 1], [], []>} : vector<8x128xf32>, vector<128x128xf32>, vector<8x128xf32> -> vector<8x128xf32>
    %14 = vector.broadcast %3 : vector<1x128xf32> to vector<8x128xf32>
    %15 = arith.addf %13, %14 : vector<8x128xf32>
    %16 = arith.addf %15, %0 : vector<8x128xf32>
    %cst_9 = arith.constant dense<0.000000e+00> : vector<8xf32>
    %17 = vector.multi_reduction <add>, %16, %cst_9 [1] : vector<8x128xf32> to vector<8xf32>
    %18 = vector.shape_cast %17 : vector<8xf32> to vector<8x1xf32>
    %cst_10 = arith.constant 7.812500e-03 : f32
    %19 = vector.broadcast %cst_10 : f32 to vector<8x1xf32>
    %20 = arith.mulf %18, %19 : vector<8x1xf32>
    %21 = vector.broadcast %20 : vector<8x1xf32> to vector<8x128xf32>
    %22 = arith.subf %16, %21 : vector<8x128xf32>
    %23 = arith.mulf %22, %22 : vector<8x128xf32>
    %cst_11 = arith.constant dense<0.000000e+00> : vector<8xf32>
    %24 = vector.multi_reduction <add>, %23, %cst_11 [1] : vector<8x128xf32> to vector<8xf32>
    %25 = vector.shape_cast %24 : vector<8xf32> to vector<8x1xf32>
    %cst_12 = arith.constant 7.812500e-03 : f32
    %26 = vector.broadcast %cst_12 : f32 to vector<8x1xf32>
    %27 = arith.mulf %25, %26 : vector<8x1xf32>
    %cst_13 = arith.constant 9.99999974E-6 : f32
    %28 = vector.broadcast %cst_13 : f32 to vector<8x1xf32>
    %29 = arith.addf %27, %28 : vector<8x1xf32>
    %30 = math.rsqrt %29 : vector<8x1xf32>
    %31 = vector.broadcast %30 : vector<8x1xf32> to vector<8x128xf32>
    %32 = arith.mulf %22, %31 : vector<8x128xf32>
    %33 = vector.broadcast %4 : vector<1x128xf32> to vector<8x128xf32>
    %34 = arith.mulf %32, %33 : vector<8x128xf32>
    %35 = vector.broadcast %5 : vector<1x128xf32> to vector<8x128xf32>
    %36 = arith.addf %34, %35 : vector<8x128xf32>
    %c0_14 = arith.constant 0 : index
    %c0_15 = arith.constant 0 : index
    %37 = vector.load %arg5[%c0_14, %c0_15] : memref<8x128xf32, #tpu.memory_space<vmem>>, vector<8x128xf32>
    tpu.vector_store %arg5[%c0_14, %c0_15], %36 {strides = array<i32>} : memref<8x128xf32, #tpu.memory_space<vmem>>, vector<8x128xf32>,
    return
  }
  func.func @transform_0(%arg0: i32) -> (i32, i32) {
    %c0_i32 = arith.constant 0 : i32
    %c0_i32_0 = arith.constant 0 : i32
    return %arg0, %c0_i32 : i32, i32
  }
  func.func @transform_1(%arg0: i32) -> (i32, i32) {
    %c0_i32 = arith.constant 0 : i32
    %c0_i32_0 = arith.constant 0 : i32
    %c0_i32_1 = arith.constant 0 : i32
    return %c0_i32, %c0_i32_0 : i32, i32
  }
  func.func @transform_2(%arg0: i32) -> (i32, i32) {
    %c0_i32 = arith.constant 0 : i32
    %c0_i32_0 = arith.constant 0 : i32
    %c0_i32_1 = arith.constant 0 : i32
    return %c0_i32, %c0_i32_0 : i32, i32
  }
  func.func @transform_3(%arg0: i32) -> (i32, i32) {
    %c0_i32 = arith.constant 0 : i32
    %c0_i32_0 = arith.constant 0 : i32
    %c0_i32_1 = arith.constant 0 : i32
    return %c0_i32, %c0_i32_0 : i32, i32
  }
  func.func @transform_4(%arg0: i32) -> (i32, i32) {
    %c0_i32 = arith.constant 0 : i32
    %c0_i32_0 = arith.constant 0 : i32
    return %arg0, %c0_i32 : i32, i32
  }
}

module attributes {stable_mosaic.version = 11 : i64} {
  func.func @_tds_fc_kernel(%arg0: i32, %arg1: memref<8x128xf32, #tpu.memory_space<vmem>>, %arg2: memref<128x128xf32, #tpu.memory_space<vmem>>, %arg3: memref<128x128xf32, #tpu.memory_space<vmem>>, %arg4: memref<4x128xf32, #tpu.memory_space<vmem>>, %arg5: memref<8x128xf32, #tpu.memory_space<vmem>>) attributes {dimension_semantics = [#tpu.dimension_semantics<parallel>], iteration_bounds = array<i64: 2>, scalar_prefetch = 0 : i64, scratch_operands = 0 : i64, tpu.core_type = #tpu.core_type<tc>, window_params = [{transform_indices = @transform_0, window_bounds = array<i64: 8, 128>}, {pipeline_mode = #tpu.pipeline_mode<synchronous>, transform_indices = @transform_1, window_bounds = array<i64: 128, 128>}, {pipeline_mode = #tpu.pipeline_mode<synchronous>, transform_indices = @transform_2, window_bounds = array<i64: 128, 128>}, {pipeline_mode = #tpu.pipeline_mode<synchronous>, transform_indices = @transform_3, window_bounds = array<i64: 4, 128>}, {transform_indices = @transform_4, window_bounds = array<i64: 8, 128>}]} {
    %c0 = arith.constant 0 : index
    %c0_0 = arith.constant 0 : index
    %0 = vector.load %arg1[%c0, %c0_0] : memref<8x128xf32, #tpu.memory_space<vmem>>, vector<8x128xf32>
    %c0_1 = arith.constant 0 : index
    %c0_2 = arith.constant 0 : index
    %1 = vector.load %arg4[%c0_1, %c0_2] : memref<4x128xf32, #tpu.memory_space<vmem>>, vector<4x128xf32>
    %2 = vector.extract_strided_slice %1 {offsets = [0, 0], sizes = [1, 128], strides = [1, 1]} : vector<4x128xf32> to vector<1x128xf32>
    %3 = vector.extract_strided_slice %1 {offsets = [1, 0], sizes = [1, 128], strides = [1, 1]} : vector<4x128xf32> to vector<1x128xf32>
    %4 = vector.extract_strided_slice %1 {offsets = [2, 0], sizes = [1, 128], strides = [1, 1]} : vector<4x128xf32> to vector<1x128xf32>
    %5 = vector.extract_strided_slice %1 {offsets = [3, 0], sizes = [1, 128], strides = [1, 1]} : vector<4x128xf32> to vector<1x128xf32>
    %c0_3 = arith.constant 0 : index
    %c0_4 = arith.constant 0 : index
    %6 = vector.load %arg2[%c0_3, %c0_4] : memref<128x128xf32, #tpu.memory_space<vmem>>, vector<128x128xf32>
    %cst = arith.constant dense<0.000000e+00> : vector<8x128xf32>
    %7 = tpu.matmul %0, %6, %cst {dimension_numbers = #tpu.dot_dimension_numbers<[1], [0], [0], [1], [0, 0, 1, 1], [], []>} : vector<8x128xf32>, vector<128x128xf32>, vector<8x128xf32> -> vector<8x128xf32>
    %8 = vector.broadcast %2 : vector<1x128xf32> to vector<8x128xf32>
    %9 = arith.addf %7, %8 : vector<8x128xf32>
    %cst_5 = arith.constant 0.000000e+00 : f32
    %10 = vector.broadcast %cst_5 : f32 to vector<8x128xf32>
    %11 = arith.maximumf %9, %10 : vector<8x128xf32>
    %c0_6 = arith.constant 0 : index
    %c0_7 = arith.constant 0 : index
    %12 = vector.load %arg3[%c0_6, %c0_7] : memref<128x128xf32, #tpu.memory_space<vmem>>, vector<128x128xf32>
    %cst_8 = arith.constant dense<0.000000e+00> : vector<8x128xf32>
    %13 = tpu.matmul %11, %12, %cst_8 {dimension_numbers = #tpu.dot_dimension_numbers<[1], [0], [0], [1], [0, 0, 1, 1], [], []>} : vector<8x128xf32>, vector<128x128xf32>, vector<8x128xf32> -> vector<8x128xf32>
    %14 = vector.broadcast %3 : vector<1x128xf32> to vector<8x128xf32>
    %15 = arith.addf %13, %14 : vector<8x128xf32>
    %16 = arith.addf %15, %0 : vector<8x128xf32>
    %cst_9 = arith.constant dense<0.000000e+00> : vector<8xf32>
    %17 = vector.multi_reduction <add>, %16, %cst_9 [1] : vector<8x128xf32> to vector<8xf32>
    %18 = vector.shape_cast %17 : vector<8xf32> to vector<8x1xf32>
    %cst_10 = arith.constant 7.812500e-03 : f32
    %19 = vector.broadcast %cst_10 : f32 to vector<8x1xf32>
    %20 = arith.mulf %18, %19 : vector<8x1xf32>
    %21 = vector.broadcast %20 : vector<8x1xf32> to vector<8x128xf32>
    %22 = arith.subf %16, %21 : vector<8x128xf32>
    %23 = arith.mulf %22, %22 : vector<8x128xf32>
    %cst_11 = arith.constant dense<0.000000e+00> : vector<8xf32>
    %24 = vector.multi_reduction <add>, %23, %cst_11 [1] : vector<8x128xf32> to vector<8xf32>
    %25 = vector.shape_cast %24 : vector<8xf32> to vector<8x1xf32>
    %cst_12 = arith.constant 7.812500e-03 : f32
    %26 = vector.broadcast %cst_12 : f32 to vector<8x1xf32>
    %27 = arith.mulf %25, %26 : vector<8x1xf32>
    %cst_13 = arith.constant 9.99999974E-6 : f32
    %28 = vector.broadcast %cst_13 : f32 to vector<8x1xf32>
    %29 = arith.addf %27, %28 : vector<8x1xf32>
    %30 = math.rsqrt %29 : vector<8x1xf32>
    %31 = vector.broadcast %30 : vector<8x1xf32> to vector<8x128xf32>
    %32 = arith.mulf %22, %31 : vector<8x128xf32>
    %33 = vector.broadcast %4 : vector<1x128xf32> to vector<8x128xf32>
    %34 = arith.mulf %32, %33 : vector<8x128xf32>
    %35 = vector.broadcast %5 : vector<1x128xf32> to vector<8x128xf32>
    %36 = arith.addf %34, %35 : vector<8x128xf32>
    %c0_14 = arith.constant 0 : index
    %c0_15 = arith.constant 0 : index
    %37 = vector.load %arg5[%c0_14, %c0_15] : memref<8x128xf32, #tpu.memory_space<vmem>>, vector<8x128xf32>
    tpu.vector_store %arg5[%c0_14, %c0_15], %36 {strides = array<i32>} : memref<8x128xf32, #tpu.memory_space<vmem>>, vector<8x128xf32>,
    return
  }
  func.func @transform_0(%arg0: i32) -> (i32, i32) {
    %c0_i32 = arith.constant 0 : i32
    %c0_i32_0 = arith.constant 0 : i32
    return %arg0, %c0_i32 : i32, i32
  }
  func.func @transform_1(%arg0: i32) -> (i32, i32) {
    %c0_i32 = arith.constant 0 : i32
    %c0_i32_0 = arith.constant 0 : i32
    %c0_i32_1 = arith.constant 0 : i32
    return %c0_i32, %c0_i32_0 : i32, i32
  }
  func.func @transform_2(%arg0: i32) -> (i32, i32) {
    %c0_i32 = arith.constant 0 : i32
    %c0_i32_0 = arith.constant 0 : i32
    %c0_i32_1 = arith.constant 0 : i32
    return %c0_i32, %c0_i32_0 : i32, i32
  }
  func.func @transform_3(%arg0: i32) -> (i32, i32) {
    %c0_i32 = arith.constant 0 : i32
    %c0_i32_0 = arith.constant 0 : i32
    %c0_i32_1 = arith.constant 0 : i32
    return %c0_i32, %c0_i32_0 : i32, i32
  }
  func.func @transform_4(%arg0: i32) -> (i32, i32) {
    %c0_i32 = arith.constant 0 : i32
    %c0_i32_0 = arith.constant 0 : i32
    return %arg0, %c0_i32 : i32, i32
  }
}

</mosaic_0001>

<llo_original>
// kernel: _tds_fc_apply_impl.1
$region0: #{_tds_fc_apply_impl.1}
  #allocation0 [shape = 'u32[]', space=smem, size = 0x4, offset = 0x4, fixed_abs, tag = 'smem constant byte address 0x4 - core index']
  #allocation1 [shape = 'u32[144,128]{1,0:T(1,128)}', space=vmem, size = 0x12000, scoped, tag = 'internal scratch']
  %s0 = inlined_call_operand.hbm [shape: f32[16,128], index: 0, kind: input, shape index: {}]
  %s1 = inlined_call_operand.hbm [shape: f32[128,128], index: 1, kind: input, shape index: {}]
  %s2 = inlined_call_operand.hbm [shape: f32[128,128], index: 2, kind: input, shape index: {}]
  %s3 = inlined_call_operand.vmem [shape: f32[4,128], index: 3, kind: input, shape index: {}]
  %s4 = inlined_call_operand.hbm [shape: f32[16,128], index: 4, kind: output, shape index: {}]
  %s5 = sld [smem:[#allocation0]]
  $region61: #{_tds_fc_apply_impl.1} parent=0
    _
  %s7 = ssub.s32 1, %s5
  %s8 = scalar_select 0, %s7, %s5
  $region1: #{_tds_fc_apply_impl.1} parent=0
    #allocation2 [shape = 'u8[8192]{0}', space=vmem, size = 0x2000, scoped, tag = 'input window, operand 0']
    #allocation3 [shape = 's32[2]{0}', space=sflag, size = 0x8, scoped, tag = 'scoped memory for _tds_fc_apply_impl.1']
    #allocation4 [shape = 's32[2]{0}', space=sflag, size = 0x8, scoped, tag = 'scoped memory for _tds_fc_apply_impl.1']
    #allocation5 [shape = 'u8[65536]{0}', space=vmem, size = 0x10000, scoped, tag = 'input window, operand 1, single buffered']
    #allocation6 [shape = 's32[1]{0}', space=sflag, size = 0x4, scoped, tag = 'scoped memory for _tds_fc_apply_impl.1']
    #allocation7 [shape = 'u8[65536]{0}', space=vmem, size = 0x10000, scoped, tag = 'input window, operand 2, single buffered']
    #allocation8 [shape = 'u8[8192]{0}', space=vmem, size = 0x2000, scoped, tag = 'output window, operand 0']
    %9 = vsyncpa [#allocation3], 0
    %s10 = scalar_lea.sflag [#allocation3], 1
    %11 = vsyncpa %s10, 0
    %12 = vsyncpa [#allocation6], 0
    %13 = vsyncpa [#allocation4], 0
    %s14 = scalar_lea.sflag [#allocation4], 1
    %15 = vsyncpa %s14, 0
    loop: start=0, step=1, limit=4
    $region2: #{_tds_fc_apply_impl.1} parent=1 // loop_pre_header
      _
    $region3: #{_tds_fc_apply_impl.1} parent=1 // loop_header
      %s17 = sphi 0, %s21
      %p18 = scmp.ge.s32.totalorder %s17, 4
      %s27 = sphi 0, %s29
      %s30 = sphi 0, %s27
      %s31 = sphi 0, %s30
      %s47 = sphi 0, %s31
      %s51 = sphi 0, %s51
      %s53 = sphi 0, %s51
      %s54 = sphi 0, %s53
      %s68 = sphi 0, %s54
      %s72 = sphi 0, %s72
      %s74 = sphi 0, %s72
      %s75 = sphi 0, %s74
      %s89 = sphi 0, %s75
      %s93 = sphi 0, %s93
      %s95 = sphi 0, %s93
      %s96 = sphi 0, %s95
      %s110 = sphi 0, %s96
      %s116 = sphi 0, %s118
      %s119 = sphi 0, %s116
      %s120 = sphi 0, %s119
      %s136 = sphi 0, %s120
    $region4: #{_tds_fc_apply_impl.1} parent=1 // loop_header_branch
      %20 = sbr.rel (%p18) target = $region8
    $region5: #{_tds_fc_apply_impl.1} parent=1 // loop_body
      %s22 = ssub.s32 %s17, 1
      %s23 = ssub.s32 %s17, 2
      %s24 = sadd.s32 %s17, 1
      %s25 = ssub.s32 %s17, %s24
      %p26 = scmp.eq.s32.totalorder %s25, 0
      %s28 = sadd.s32 %s27, 1
      %s29 = scalar_select %p26, %s27, %s28
      %p32 = pneg %p26
      %p33 = scmp.eq.s32.totalorder %s17, 1
      %p34 = por %p32, %p33
      %p35 = scmp.ne.s32.totalorder %s27, %s30
      %p36 = scmp.eq.s32.totalorder %s17, 0
      %p37 = por %p35, %p36
      %p38 = scmp.ne.s32.totalorder %s27, %s30
      %p39 = scmp.eq.s32.totalorder %s22, 1
      %p40 = por %p38, %p39
      %p41 = scmp.ne.s32.totalorder %s30, %s31
      %p42 = scmp.eq.s32.totalorder %s22, 0
      %p43 = por %p41, %p42
      %p44 = scmp.ne.s32.totalorder %s30, %s31
      %p45 = scmp.eq.s32.totalorder %s23, 1
      %p46 = por %p44, %p45
      %p48 = scmp.ne.s32.totalorder %s31, %s47
      %p49 = scmp.eq.s32.totalorder %s23, 0
      %p50 = por %p48, %p49
      %s52 = sadd.s32 %s51, 1
      %p55 = scmp.eq.s32.totalorder %s17, 1
      %p56 = scmp.ne.s32.totalorder %s51, %s53
      %p57 = scmp.eq.s32.totalorder %s17, 0
      %p58 = por %p56, %p57
      %p59 = scmp.ne.s32.totalorder %s51, %s53
      %p60 = scmp.eq.s32.totalorder %s22, 1
      %p61 = por %p59, %p60
      %p62 = scmp.ne.s32.totalorder %s53, %s54
      %p63 = scmp.eq.s32.totalorder %s22, 0
      %p64 = por %p62, %p63
      %p65 = scmp.ne.s32.totalorder %s53, %s54
      %p66 = scmp.eq.s32.totalorder %s23, 1
      %p67 = por %p65, %p66
      %p69 = scmp.ne.s32.totalorder %s54, %s68
      %p70 = scmp.eq.s32.totalorder %s23, 0
      %p71 = por %p69, %p70
      %s73 = sadd.s32 %s72, 1
      %p76 = scmp.eq.s32.totalorder %s17, 1
      %p77 = scmp.ne.s32.totalorder %s72, %s74
      %p78 = scmp.eq.s32.totalorder %s17, 0
      %p79 = por %p77, %p78
      %p80 = scmp.ne.s32.totalorder %s72, %s74
      %p81 = scmp.eq.s32.totalorder %s22, 1
      %p82 = por %p80, %p81
      %p83 = scmp.ne.s32.totalorder %s74, %s75
      %p84 = scmp.eq.s32.totalorder %s22, 0
      %p85 = por %p83, %p84
      %p86 = scmp.ne.s32.totalorder %s74, %s75
      %p87 = scmp.eq.s32.totalorder %s23, 1
      %p88 = por %p86, %p87
      %p90 = scmp.ne.s32.totalorder %s75, %s89
      %p91 = scmp.eq.s32.totalorder %s23, 0
      %p92 = por %p90, %p91
      %s94 = sadd.s32 %s93, 1
      %p97 = scmp.eq.s32.totalorder %s17, 1
      %p98 = scmp.ne.s32.totalorder %s93, %s95
      %p99 = scmp.eq.s32.totalorder %s17, 0
      %p100 = por %p98, %p99
      %p101 = scmp.ne.s32.totalorder %s93, %s95
      %p102 = scmp.eq.s32.totalorder %s22, 1
      %p103 = por %p101, %p102
      %p104 = scmp.ne.s32.totalorder %s95, %s96
      %p105 = scmp.eq.s32.totalorder %s22, 0
      %p106 = por %p104, %p105
      %p107 = scmp.ne.s32.totalorder %s95, %s96
      %p108 = scmp.eq.s32.totalorder %s23, 1
      %p109 = por %p107, %p108
      %p111 = scmp.ne.s32.totalorder %s96, %s110
      %p112 = scmp.eq.s32.totalorder %s23, 0
      %p113 = por %p111, %p112
      %s114 = ssub.s32 %s17, %s24
      %p115 = scmp.eq.s32.totalorder %s114, 0
      %s117 = sadd.s32 %s116, 1
      %s118 = scalar_select %p115, %s116, %s117
      %p121 = pneg %p115
      %p122 = scmp.eq.s32.totalorder %s17, 1
      %p123 = por %p121, %p122
      %p124 = scmp.ne.s32.totalorder %s116, %s119
      %p125 = scmp.eq.s32.totalorder %s17, 0
      %p126 = por %p124, %p125
      %p127 = scmp.ne.s32.totalorder %s116, %s119
      %p128 = scmp.eq.s32.totalorder %s22, 1
      %p129 = por %p127, %p128
      %p130 = scmp.ne.s32.totalorder %s119, %s120
      %p131 = scmp.eq.s32.totalorder %s22, 0
      %p132 = por %p130, %p131
      %p133 = scmp.ne.s32.totalorder %s119, %s120
      %p134 = scmp.eq.s32.totalorder %s23, 1
      %p135 = por %p133, %p134
      %p137 = scmp.ne.s32.totalorder %s120, %s136
      %p138 = scmp.eq.s32.totalorder %s23, 0
      %p139 = por %p137, %p138
      %p140 = scmp.le.s32.totalorder 1, %s17
      %p141 = scmp.lt.s32.totalorder %s17, 3
      %p142 = pnand %p140, %p141
      %p143 = pneg %p142
      // Predicated region
      $region9: #{_tds_fc_apply_impl.1} parent=5 // pred_check
        _
      $region10: #{_tds_fc_apply_impl.1} parent=5 // pred_check_branch
        %145 = sbr.rel (%p142) target = $region12
      $region11: #{_tds_fc_apply_impl.1} parent=5 // pred_region
        %s146 = ssub.s32 %s17, 1
        // Predicated region
        $region13: #{_tds_fc_apply_impl.1} parent=11 // pred_check
          %p147 = pneg %p64
        $region14: #{_tds_fc_apply_impl.1} parent=11 // pred_check_branch
          %149 = sbr.rel (%p147) target = $region16
        $region15: #{_tds_fc_apply_impl.1} parent=11 // pred_region
          %s151 = ssub.s32 2048, 2048
          %152 = vsyncadd [#allocation6], %s151
          %s153 = sshll.u32 [#allocation5], 4
          %s154 = int_to_ptr.vmem [resolvable:$true] %s153
          %159 = dma.hbm_to_vmem [thread:$0]  %s1, 2048, %s154, [#allocation6], 128, 128, 8
        $region16: #{_tds_fc_apply_impl.1} parent=11 // pred_fallthru
          _
        // Predicated region
        $region17: #{_tds_fc_apply_impl.1} parent=11 // pred_check
          %p160 = pneg %p85
        $region18: #{_tds_fc_apply_impl.1} parent=11 // pred_check_branch
          %162 = sbr.rel (%p160) target = $region20
        $region19: #{_tds_fc_apply_impl.1} parent=11 // pred_region
          %s164 = ssub.s32 2048, 2048
          %165 = vsyncadd [#allocation6], %s164
          %s166 = sshll.u32 [#allocation7], 4
          %s167 = int_to_ptr.vmem [resolvable:$true] %s166
          %172 = dma.hbm_to_vmem [thread:$0]  %s2, 2048, %s167, [#allocation6], 128, 128, 8
        $region20: #{_tds_fc_apply_impl.1} parent=11 // pred_fallthru
          _
        // Predicated region
        $region21: #{_tds_fc_apply_impl.1} parent=11 // pred_check
          %p173 = pneg %p106
        $region22: #{_tds_fc_apply_impl.1} parent=11 // pred_check_branch
          %175 = sbr.rel (%p173) target = $region24
        $region23: #{_tds_fc_apply_impl.1} parent=11 // pred_region
          _
        $region24: #{_tds_fc_apply_impl.1} parent=11 // pred_fallthru
          _
      $region12: #{_tds_fc_apply_impl.1} parent=5 // pred_fallthru
        _
      %p176 = scmp.lt.s32.totalorder %s17, 2
      // Predicated region
      $region25: #{_tds_fc_apply_impl.1} parent=5 // pred_check
        %p177 = pneg %p176
      $region26: #{_tds_fc_apply_impl.1} parent=5 // pred_check_branch
        %179 = sbr.rel (%p177) target = $region28
      $region27: #{_tds_fc_apply_impl.1} parent=5 // pred_region
        // Predicated region
        $region29: #{_tds_fc_apply_impl.1} parent=27 // pred_check
          %p180 = pneg %p37
        $region30: #{_tds_fc_apply_impl.1} parent=27 // pred_check_branch
          %182 = sbr.rel (%p180) target = $region32
        $region31: #{_tds_fc_apply_impl.1} parent=27 // pred_region
          %s183 = sand.u32 %s27, 1
          %s184 = scalar_lea.sflag [#allocation3], %s183
          %s185 = sand.u32 %s27, 1
          %s186 = smul.addr %s185, 8
          %s187 = scalar_lea.vmem [#allocation2], %s186
          %s189 = ssub.s32 128, 128
          %190 = vsyncadd %s184, %s189
          %s191 = smul.addr %s17, 128
          %s192 = scalar_lea.hbm %s0, %s191
          %s194 = sshll.u32 %s187, 4
          %s195 = int_to_ptr.vmem [resolvable:$true] %s194
          %197 = dma.hbm_to_vmem [thread:$0]  %s192, 128, %s195, %s184
        $region32: #{_tds_fc_apply_impl.1} parent=27 // pred_fallthru
          _
      $region28: #{_tds_fc_apply_impl.1} parent=5 // pred_fallthru
        _
      %p198 = scmp.le.s32.totalorder 1, %s17
      %p199 = scmp.lt.s32.totalorder %s17, 3
      %p200 = pnand %p198, %p199
      %p201 = pneg %p200
      // Predicated region
      $region33: #{_tds_fc_apply_impl.1} parent=5 // pred_check
        _
      $region34: #{_tds_fc_apply_impl.1} parent=5 // pred_check_branch
        %203 = sbr.rel (%p200) target = $region36
      $region35: #{_tds_fc_apply_impl.1} parent=5 // pred_region
        %s204 = ssub.s32 %s17, 1
        %s205 = sand.u32 %s30, 1
        %s206 = scalar_lea.sflag [#allocation3], %s205
        %s207 = sand.u32 %s30, 1
        %s208 = smul.addr %s207, 8
        %s209 = scalar_lea.vmem [#allocation2], %s208
        // Predicated region
        $region37: #{_tds_fc_apply_impl.1} parent=35 // pred_check
          %p210 = pneg %p43
        $region38: #{_tds_fc_apply_impl.1} parent=35 // pred_check_branch
          %212 = sbr.rel (%p210) target = $region40
        $region39: #{_tds_fc_apply_impl.1} parent=35 // pred_region
          %213 = dma.done %s206, 128
        $region40: #{_tds_fc_apply_impl.1} parent=35 // pred_fallthru
          _
        // Predicated region
        $region41: #{_tds_fc_apply_impl.1} parent=35 // pred_check
          %p214 = pneg %p64
        $region42: #{_tds_fc_apply_impl.1} parent=35 // pred_check_branch
          %216 = sbr.rel (%p214) target = $region44
        $region43: #{_tds_fc_apply_impl.1} parent=35 // pred_region
          %217 = dma.done [#allocation6], 2048
        $region44: #{_tds_fc_apply_impl.1} parent=35 // pred_fallthru
          _
        // Predicated region
        $region45: #{_tds_fc_apply_impl.1} parent=35 // pred_check
          %p218 = pneg %p85
        $region46: #{_tds_fc_apply_impl.1} parent=35 // pred_check_branch
          %220 = sbr.rel (%p218) target = $region48
        $region47: #{_tds_fc_apply_impl.1} parent=35 // pred_region
          %221 = dma.done [#allocation6], 2048
        $region48: #{_tds_fc_apply_impl.1} parent=35 // pred_fallthru
          _
        %s222 = sand.u32 %s30, 1
        %s223 = scalar_lea.sflag [#allocation3], %s222
        %s224 = sand.u32 %s30, 1
        %s225 = smul.addr %s224, 8
        %s226 = scalar_lea.vmem [#allocation2], %s225
        %p227 = pneg %p43
        %p228 = pneg %p40
        %p229 = pneg %p64
        %p230 = pneg %p61
        %p231 = pneg %p85
        %p232 = pneg %p82
        %p233 = pneg %p106
        %p234 = pneg %p103
        %p235 = pneg %p132
        %p236 = pneg %p129
        %s237 = sand.u32 %s119, 1
        %s238 = scalar_lea.sflag [#allocation4], %s237
        %s239 = sand.u32 %s119, 1
        %s240 = smul.addr %s239, 8
        %s241 = scalar_lea.vmem [#allocation8], %s240
        %v242 = vld [vmem:[%s209] sm:$0xff]
        %v243 = vld [vmem:[%s3] sm:$0xf]
        %v244 = vld [vmem:[#allocation5] sm:$0xff]
        %v245 = vld [vmem:[#allocation5 + $0x8] sm:$0xff]
        %v246 = vld [vmem:[#allocation5 + $0x10] sm:$0xff]
        %v247 = vld [vmem:[#allocation5 + $0x18] sm:$0xff]
        %v248 = vld [vmem:[#allocation5 + $0x20] sm:$0xff]
        %v249 = vld [vmem:[#allocation5 + $0x28] sm:$0xff]
        %v250 = vld [vmem:[#allocation5 + $0x30] sm:$0xff]
        %v251 = vld [vmem:[#allocation5 + $0x38] sm:$0xff]
        %v252 = vld [vmem:[#allocation5 + $0x40] sm:$0xff]
        %v253 = vld [vmem:[#allocation5 + $0x48] sm:$0xff]
        %v254 = vld [vmem:[#allocation5 + $0x50] sm:$0xff]
        %v255 = vld [vmem:[#allocation5 + $0x58] sm:$0xff]
        %v256 = vld [vmem:[#allocation5 + $0x60] sm:$0xff]
        %v257 = vld [vmem:[#allocation5 + $0x68] sm:$0xff]
        %v258 = vld [vmem:[#allocation5 + $0x70] sm:$0xff]
        %v259 = vld [vmem:[#allocation5 + $0x78] sm:$0xff]
        %v260 = vlaneseq
        %v261 = vshrl.u32 %v260, 7
        %v262 = vsub.s32 0, %v261
        %v263 = vrot.slane %v243, %v262
        %264 = vmatprep.subr.mxu0 0.0
        %265 = vmatpush1.msra.mxu0 %v244
        %266 = vmatprep.subr.mxu0 0.0
        %267 = vmatpush1.msra.mxu0 %v245
        %268 = vmatprep.subr.mxu0 0.0
        %269 = vmatpush1.msra.mxu0 %v246
        %270 = vmatprep.subr.mxu0 0.0
        %271 = vmatpush1.msra.mxu0 %v247
        %272 = vmatprep.subr.mxu0 0.0
        %273 = vmatpush1.msra.mxu0 %v248
        %274 = vmatprep.subr.mxu0 0.0
        %275 = vmatpush1.msra.mxu0 %v249
        %276 = vmatprep.subr.mxu0 0.0
        %277 = vmatpush1.msra.mxu0 %v250
        %278 = vmatprep.subr.mxu0 0.0
        %279 = vmatpush1.msra.mxu0 %v251
        %280 = vmatprep.subr.mxu0 0.0
        %281 = vmatpush1.msra.mxu0 %v252
        %282 = vmatprep.subr.mxu0 0.0
        %283 = vmatpush1.msra.mxu0 %v253
        %284 = vmatprep.subr.mxu0 0.0
        %285 = vmatpush1.msra.mxu0 %v254
        %286 = vmatprep.subr.mxu0 0.0
        %287 = vmatpush1.msra.mxu0 %v255
        %288 = vmatprep.subr.mxu0 0.0
        %289 = vmatpush1.msra.mxu0 %v256
        %290 = vmatprep.subr.mxu0 0.0
        %291 = vmatpush1.msra.mxu0 %v257
        %292 = vmatprep.subr.mxu0 0.0
        %293 = vmatpush1.msra.mxu0 %v258
        %294 = vmatprep.subr.mxu0 0.0
        %295 = vmatpush1.msra.mxu0 %v259
        %296 = vmatprep.subr.mxu0 0.0
        %297 = vmatpush1.msra.mxu0 0.0
        %298 = vmatprep.subr.mxu0 0.0
        %299 = vmatpush1.msra.mxu0 0.0
        %300 = vmatprep.subr.mxu0 0.0
        %301 = vmatpush1.msra.mxu0 0.0
        %302 = vmatprep.subr.mxu0 0.0
        %303 = vmatpush1.msra.mxu0 0.0
        %304 = vmatprep.subr.mxu0 0.0
        %305 = vmatpush1.msra.mxu0 0.0
        %306 = vmatprep.subr.mxu0 0.0
        %307 = vmatpush1.msra.mxu0 0.0
        %308 = vmatprep.subr.mxu0 0.0
        %309 = vmatpush1.msra.mxu0 0.0
        %310 = vmatprep.subr.mxu0 0.0
        %311 = vmatpush1.msra.mxu0 0.0
        %312 = vmatprep.subr.mxu0 0.0
        %313 = vmatpush1.msra.mxu0 0.0
        %314 = vmatprep.subr.mxu0 0.0
        %315 = vmatpush1.msra.mxu0 0.0
        %316 = vmatprep.subr.mxu0 0.0
        %317 = vmatpush1.msra.mxu0 0.0
        %318 = vmatprep.subr.mxu0 0.0
        %319 = vmatpush1.msra.mxu0 0.0
        %320 = vmatprep.subr.mxu0 0.0
        %321 = vmatpush1.msra.mxu0 0.0
        %322 = vmatprep.subr.mxu0 0.0
        %323 = vmatpush1.msra.mxu0 0.0
        %324 = vmatprep.subr.mxu0 0.0
        %325 = vmatpush1.msra.mxu0 0.0
        %326 = vmatprep.subr.mxu0 0.0
        %327 = vmatpush1.msra.mxu0 0.0
        %328 = vmatprep.mubr.f32.mxu0 0.0
        %329 = vmatmul.mubr.f32.gmra.mrb[0].mxu0 %v242
        %v330 = vpop.f32.mrb[0].mxu0
        %v331 = vadd.f32 %v263, %v330
        %v332 = vpop.f32.mrb[0].mxu0
        %333 = vdwg.mxu0
        %v334 = vmax.f32 %v331, 0.0
        %v335 = vld [vmem:[#allocation7] sm:$0xff]
        %v336 = vld [vmem:[#allocation7 + $0x8] sm:$0xff]
        %v337 = vld [vmem:[#allocation7 + $0x10] sm:$0xff]
        %v338 = vld [vmem:[#allocation7 + $0x18] sm:$0xff]
        %v339 = vld [vmem:[#allocation7 + $0x20] sm:$0xff]
        %v340 = vld [vmem:[#allocation7 + $0x28] sm:$0xff]
        %v341 = vld [vmem:[#allocation7 + $0x30] sm:$0xff]
        %v342 = vld [vmem:[#allocation7 + $0x38] sm:$0xff]
        %v343 = vld [vmem:[#allocation7 + $0x40] sm:$0xff]
        %v344 = vld [vmem:[#allocation7 + $0x48] sm:$0xff]
        %v345 = vld [vmem:[#allocation7 + $0x50] sm:$0xff]
        %v346 = vld [vmem:[#allocation7 + $0x58] sm:$0xff]
        %v347 = vld [vmem:[#allocation7 + $0x60] sm:$0xff]
        %v348 = vld [vmem:[#allocation7 + $0x68] sm:$0xff]
        %v349 = vld [vmem:[#allocation7 + $0x70] sm:$0xff]
        %v350 = vld [vmem:[#allocation7 + $0x78] sm:$0xff]
        %v351 = vlaneseq
        %v352 = vshrl.u32 %v351, 7
        %v353 = vsub.s32 1, %v352
        %v354 = vrot.slane %v243, %v353
        %355 = vmatprep.subr.mxu0 0.0
        %356 = vmatpush1.msra.mxu0 %v335
        %357 = vmatprep.subr.mxu0 0.0
        %358 = vmatpush1.msra.mxu0 %v336
        %359 = vmatprep.subr.mxu0 0.0
        %360 = vmatpush1.msra.mxu0 %v337
        %361 = vmatprep.subr.mxu0 0.0
        %362 = vmatpush1.msra.mxu0 %v338
        %363 = vmatprep.subr.mxu0 0.0
        %364 = vmatpush1.msra.mxu0 %v339
        %365 = vmatprep.subr.mxu0 0.0
        %366 = vmatpush1.msra.mxu0 %v340
        %367 = vmatprep.subr.mxu0 0.0
        %368 = vmatpush1.msra.mxu0 %v341
        %369 = vmatprep.subr.mxu0 0.0
        %370 = vmatpush1.msra.mxu0 %v342
        %371 = vmatprep.subr.mxu0 0.0
        %372 = vmatpush1.msra.mxu0 %v343
        %373 = vmatprep.subr.mxu0 0.0
        %374 = vmatpush1.msra.mxu0 %v344
        %375 = vmatprep.subr.mxu0 0.0
        %376 = vmatpush1.msra.mxu0 %v345
        %377 = vmatprep.subr.mxu0 0.0
        %378 = vmatpush1.msra.mxu0 %v346
        %379 = vmatprep.subr.mxu0 0.0
        %380 = vmatpush1.msra.mxu0 %v347
        %381 = vmatprep.subr.mxu0 0.0
        %382 = vmatpush1.msra.mxu0 %v348
        %383 = vmatprep.subr.mxu0 0.0
        %384 = vmatpush1.msra.mxu0 %v349
        %385 = vmatprep.subr.mxu0 0.0
        %386 = vmatpush1.msra.mxu0 %v350
        %387 = vmatprep.subr.mxu0 0.0
        %388 = vmatpush1.msra.mxu0 0.0
        %389 = vmatprep.subr.mxu0 0.0
        %390 = vmatpush1.msra.mxu0 0.0
        %391 = vmatprep.subr.mxu0 0.0
        %392 = vmatpush1.msra.mxu0 0.0
        %393 = vmatprep.subr.mxu0 0.0
        %394 = vmatpush1.msra.mxu0 0.0
        %395 = vmatprep.subr.mxu0 0.0
        %396 = vmatpush1.msra.mxu0 0.0
        %397 = vmatprep.subr.mxu0 0.0
        %398 = vmatpush1.msra.mxu0 0.0
        %399 = vmatprep.subr.mxu0 0.0
        %400 = vmatpush1.msra.mxu0 0.0
        %401 = vmatprep.subr.mxu0 0.0
        %402 = vmatpush1.msra.mxu0 0.0
        %403 = vmatprep.subr.mxu0 0.0
        %404 = vmatpush1.msra.mxu0 0.0
        %405 = vmatprep.subr.mxu0 0.0
        %406 = vmatpush1.msra.mxu0 0.0
        %407 = vmatprep.subr.mxu0 0.0
        %408 = vmatpush1.msra.mxu0 0.0
        %409 = vmatprep.subr.mxu0 0.0
        %410 = vmatpush1.msra.mxu0 0.0
        %411 = vmatprep.subr.mxu0 0.0
        %412 = vmatpush1.msra.mxu0 0.0
        %413 = vmatprep.subr.mxu0 0.0
        %414 = vmatpush1.msra.mxu0 0.0
        %415 = vmatprep.subr.mxu0 0.0
        %416 = vmatpush1.msra.mxu0 0.0
        %417 = vmatprep.subr.mxu0 0.0
        %418 = vmatpush1.msra.mxu0 0.0
        %419 = vmatprep.mubr.f32.mxu0 0.0
        %420 = vmatmul.mubr.f32.gmra.mrb[0].mxu0 %v334
        %v421 = vpop.f32.mrb[0].mxu0
        %v422 = vadd.f32 %v354, %v421
        %v423 = vpop.f32.mrb[0].mxu0
        %424 = vdwg.mxu0
        %v425 = vadd.f32 %v422, %v242
        %426 = vadd.xlane.f32.xlu0 %v425
        %v427 = vpop.xlane.xlu0 %426
        %v428 = vmul.f32 %v427, 0.0078125
        %v429 = vsub.f32 %v425, %v428
        %v430 = vmul.f32 %v429, %v429
        %431 = vadd.xlane.f32.xlu0 %v430
        %v432 = vpop.xlane.xlu0 %431
        %v433 = vmul.f32 %v432, 0.0078125
        %v434 = vadd.f32 %v433, 1e-05
        %v435 = vrsqrt.pop %v434
        %v436 = vmul.f32 %v429, %v435
        %v437 = vlaneseq
        %v438 = vshrl.u32 %v437, 7
        %v439 = vsub.s32 2, %v438
        %v440 = vrot.slane %v243, %v439
        %v441 = vmul.f32 %v436, %v440
        %v442 = vlaneseq
        %v443 = vshrl.u32 %v442, 7
        %v444 = vsub.s32 3, %v443
        %v445 = vrot.slane %v243, %v444
        %v446 = vadd.f32 %v441, %v445
        %447 = vst [vmem:[%s241] sm:$0xff] %v446
        %s448 = sand.u32 %s119, 1
        %s449 = scalar_lea.sflag [#allocation4], %s448
        %s450 = sand.u32 %s119, 1
        %s451 = smul.addr %s450, 8
        %s452 = scalar_lea.vmem [#allocation8], %s451
        // Predicated region
        $region49: #{_tds_fc_apply_impl.1} parent=35 // pred_check
          %p453 = pneg %p129
        $region50: #{_tds_fc_apply_impl.1} parent=35 // pred_check_branch
          %455 = sbr.rel (%p453) target = $region52
        $region51: #{_tds_fc_apply_impl.1} parent=35 // pred_region
          %s457 = ssub.s32 128, 128
          %458 = vsyncadd %s449, %s457
          %s459 = smul.addr %s22, 128
          %s460 = scalar_lea.hbm %s4, %s459
          %s462 = sshll.u32 %s452, 4
          %s463 = int_to_ptr.vmem [resolvable:$true] %s462
          %465 = dma.vmem_to_hbm [thread:$0]  %s463, 128, %s460, %s449
        $region52: #{_tds_fc_apply_impl.1} parent=35 // pred_fallthru
          _
      $region36: #{_tds_fc_apply_impl.1} parent=5 // pred_fallthru
        _
      %p466 = scmp.le.s32.totalorder 2, %s17
      // Predicated region
      $region53: #{_tds_fc_apply_impl.1} parent=5 // pred_check
        %p467 = pneg %p466
      $region54: #{_tds_fc_apply_impl.1} parent=5 // pred_check_branch
        %469 = sbr.rel (%p467) target = $region56
      $region55: #{_tds_fc_apply_impl.1} parent=5 // pred_region
        %s470 = ssub.s32 %s17, 2
        // Predicated region
        $region57: #{_tds_fc_apply_impl.1} parent=55 // pred_check
          %p471 = pneg %p135
        $region58: #{_tds_fc_apply_impl.1} parent=55 // pred_check_branch
          %473 = sbr.rel (%p471) target = $region60
        $region59: #{_tds_fc_apply_impl.1} parent=55 // pred_region
          %s474 = sand.u32 %s120, 1
          %s475 = scalar_lea.sflag [#allocation4], %s474
          %s476 = sand.u32 %s120, 1
          %s477 = smul.addr %s476, 8
          %s478 = scalar_lea.vmem [#allocation8], %s477
          %479 = dma.done %s475, 128
        $region60: #{_tds_fc_apply_impl.1} parent=55 // pred_fallthru
          _
      $region56: #{_tds_fc_apply_impl.1} parent=5 // pred_fallthru
        _
    $region6: #{_tds_fc_apply_impl.1} parent=1 // loop_footer
      %s21 = sadd.s32 1, %s17
    $region7: #{_tds_fc_apply_impl.1} parent=1 // loop_footer_branch
      %16 = sbr.rel target = $region3
    $region8: #{_tds_fc_apply_impl.1} parent=1 // loop_exit
      _
    %480 = vsyncpa [#allocation3], 1
    %s481 = scalar_lea.sflag [#allocation3], 1
    %482 = vsyncpa %s481, 1
    %483 = vsyncpa [#allocation6], 1
    %484 = vsyncpa [#allocation4], 1
    %s485 = scalar_lea.sflag [#allocation4], 1
    %486 = vsyncpa %s485, 1

// kernel: _tds_fc_apply_impl.1
$region0: #{_tds_fc_apply_impl.1}
  #allocation0 [shape = 'u32[]', space=smem, size = 0x4, offset = 0x4, fixed_abs, tag = 'smem constant byte address 0x4 - core index']
  #allocation1 [shape = 'u32[144,128]{1,0:T(1,128)}', space=vmem, size = 0x12000, scoped, tag = 'internal scratch']
  %s0 = inlined_call_operand.hbm [shape: f32[16,128], index: 0, kind: input, shape index: {}]
  %s1 = inlined_call_operand.hbm [shape: f32[128,128], index: 1, kind: input, shape index: {}]
  %s2 = inlined_call_operand.hbm [shape: f32[128,128], index: 2, kind: input, shape index: {}]
  %s3 = inlined_call_operand.vmem [shape: f32[4,128], index: 3, kind: input, shape index: {}]
  %s4 = inlined_call_operand.hbm [shape: f32[16,128], index: 4, kind: output, shape index: {}]
  %s5 = sld [smem:[#allocation0]]
  $region61: #{_tds_fc_apply_impl.1} parent=0
    _
  %s7 = ssub.s32 1, %s5
  %s8 = scalar_select 0, %s7, %s5
  $region1: #{_tds_fc_apply_impl.1} parent=0
    #allocation2 [shape = 'u8[8192]{0}', space=vmem, size = 0x2000, scoped, tag = 'input window, operand 0']
    #allocation3 [shape = 's32[2]{0}', space=sflag, size = 0x8, scoped, tag = 'scoped memory for _tds_fc_apply_impl.1']
    #allocation4 [shape = 's32[2]{0}', space=sflag, size = 0x8, scoped, tag = 'scoped memory for _tds_fc_apply_impl.1']
    #allocation5 [shape = 'u8[65536]{0}', space=vmem, size = 0x10000, scoped, tag = 'input window, operand 1, single buffered']
    #allocation6 [shape = 's32[1]{0}', space=sflag, size = 0x4, scoped, tag = 'scoped memory for _tds_fc_apply_impl.1']
    #allocation7 [shape = 'u8[65536]{0}', space=vmem, size = 0x10000, scoped, tag = 'input window, operand 2, single buffered']
    #allocation8 [shape = 'u8[8192]{0}', space=vmem, size = 0x2000, scoped, tag = 'output window, operand 0']
    %9 = vsyncpa [#allocation3], 0
    %s10 = scalar_lea.sflag [#allocation3], 1
    %11 = vsyncpa %s10, 0
    %12 = vsyncpa [#allocation6], 0
    %13 = vsyncpa [#allocation4], 0
    %s14 = scalar_lea.sflag [#allocation4], 1
    %15 = vsyncpa %s14, 0
    loop: start=0, step=1, limit=4
    $region2: #{_tds_fc_apply_impl.1} parent=1 // loop_pre_header
      _
    $region3: #{_tds_fc_apply_impl.1} parent=1 // loop_header
      %s17 = sphi 0, %s21
      %p18 = scmp.ge.s32.totalorder %s17, 4
      %s27 = sphi 0, %s29
      %s30 = sphi 0, %s27
      %s31 = sphi 0, %s30
      %s47 = sphi 0, %s31
      %s51 = sphi 0, %s51
      %s53 = sphi 0, %s51
      %s54 = sphi 0, %s53
      %s68 = sphi 0, %s54
      %s72 = sphi 0, %s72
      %s74 = sphi 0, %s72
      %s75 = sphi 0, %s74
      %s89 = sphi 0, %s75
      %s93 = sphi 0, %s93
      %s95 = sphi 0, %s93
      %s96 = sphi 0, %s95
      %s110 = sphi 0, %s96
      %s116 = sphi 0, %s118
      %s119 = sphi 0, %s116
      %s120 = sphi 0, %s119
      %s136 = sphi 0, %s120
    $region4: #{_tds_fc_apply_impl.1} parent=1 // loop_header_branch
      %20 = sbr.rel (%p18) target = $region8
    $region5: #{_tds_fc_apply_impl.1} parent=1 // loop_body
      %s22 = ssub.s32 %s17, 1
      %s23 = ssub.s32 %s17, 2
      %s24 = sadd.s32 %s17, 1
      %s25 = ssub.s32 %s17, %s24
      %p26 = scmp.eq.s32.totalorder %s25, 0
      %s28 = sadd.s32 %s27, 1
      %s29 = scalar_select %p26, %s27, %s28
      %p32 = pneg %p26
      %p33 = scmp.eq.s32.totalorder %s17, 1
      %p34 = por %p32, %p33
      %p35 = scmp.ne.s32.totalorder %s27, %s30
      %p36 = scmp.eq.s32.totalorder %s17, 0
      %p37 = por %p35, %p36
      %p38 = scmp.ne.s32.totalorder %s27, %s30
      %p39 = scmp.eq.s32.totalorder %s22, 1
      %p40 = por %p38, %p39
      %p41 = scmp.ne.s32.totalorder %s30, %s31
      %p42 = scmp.eq.s32.totalorder %s22, 0
      %p43 = por %p41, %p42
      %p44 = scmp.ne.s32.totalorder %s30, %s31
      %p45 = scmp.eq.s32.totalorder %s23, 1
      %p46 = por %p44, %p45
      %p48 = scmp.ne.s32.totalorder %s31, %s47
      %p49 = scmp.eq.s32.totalorder %s23, 0
      %p50 = por %p48, %p49
      %s52 = sadd.s32 %s51, 1
      %p55 = scmp.eq.s32.totalorder %s17, 1
      %p56 = scmp.ne.s32.totalorder %s51, %s53
      %p57 = scmp.eq.s32.totalorder %s17, 0
      %p58 = por %p56, %p57
      %p59 = scmp.ne.s32.totalorder %s51, %s53
      %p60 = scmp.eq.s32.totalorder %s22, 1
      %p61 = por %p59, %p60
      %p62 = scmp.ne.s32.totalorder %s53, %s54
      %p63 = scmp.eq.s32.totalorder %s22, 0
      %p64 = por %p62, %p63
      %p65 = scmp.ne.s32.totalorder %s53, %s54
      %p66 = scmp.eq.s32.totalorder %s23, 1
      %p67 = por %p65, %p66
      %p69 = scmp.ne.s32.totalorder %s54, %s68
      %p70 = scmp.eq.s32.totalorder %s23, 0
      %p71 = por %p69, %p70
      %s73 = sadd.s32 %s72, 1
      %p76 = scmp.eq.s32.totalorder %s17, 1
      %p77 = scmp.ne.s32.totalorder %s72, %s74
      %p78 = scmp.eq.s32.totalorder %s17, 0
      %p79 = por %p77, %p78
      %p80 = scmp.ne.s32.totalorder %s72, %s74
      %p81 = scmp.eq.s32.totalorder %s22, 1
      %p82 = por %p80, %p81
      %p83 = scmp.ne.s32.totalorder %s74, %s75
      %p84 = scmp.eq.s32.totalorder %s22, 0
      %p85 = por %p83, %p84
      %p86 = scmp.ne.s32.totalorder %s74, %s75
      %p87 = scmp.eq.s32.totalorder %s23, 1
      %p88 = por %p86, %p87
      %p90 = scmp.ne.s32.totalorder %s75, %s89
      %p91 = scmp.eq.s32.totalorder %s23, 0
      %p92 = por %p90, %p91
      %s94 = sadd.s32 %s93, 1
      %p97 = scmp.eq.s32.totalorder %s17, 1
      %p98 = scmp.ne.s32.totalorder %s93, %s95
      %p99 = scmp.eq.s32.totalorder %s17, 0
      %p100 = por %p98, %p99
      %p101 = scmp.ne.s32.totalorder %s93, %s95
      %p102 = scmp.eq.s32.totalorder %s22, 1
      %p103 = por %p101, %p102
      %p104 = scmp.ne.s32.totalorder %s95, %s96
      %p105 = scmp.eq.s32.totalorder %s22, 0
      %p106 = por %p104, %p105
      %p107 = scmp.ne.s32.totalorder %s95, %s96
      %p108 = scmp.eq.s32.totalorder %s23, 1
      %p109 = por %p107, %p108
      %p111 = scmp.ne.s32.totalorder %s96, %s110
      %p112 = scmp.eq.s32.totalorder %s23, 0
      %p113 = por %p111, %p112
      %s114 = ssub.s32 %s17, %s24
      %p115 = scmp.eq.s32.totalorder %s114, 0
      %s117 = sadd.s32 %s116, 1
      %s118 = scalar_select %p115, %s116, %s117
      %p121 = pneg %p115
      %p122 = scmp.eq.s32.totalorder %s17, 1
      %p123 = por %p121, %p122
      %p124 = scmp.ne.s32.totalorder %s116, %s119
      %p125 = scmp.eq.s32.totalorder %s17, 0
      %p126 = por %p124, %p125
      %p127 = scmp.ne.s32.totalorder %s116, %s119
      %p128 = scmp.eq.s32.totalorder %s22, 1
      %p129 = por %p127, %p128
      %p130 = scmp.ne.s32.totalorder %s119, %s120
      %p131 = scmp.eq.s32.totalorder %s22, 0
      %p132 = por %p130, %p131
      %p133 = scmp.ne.s32.totalorder %s119, %s120
      %p134 = scmp.eq.s32.totalorder %s23, 1
      %p135 = por %p133, %p134
      %p137 = scmp.ne.s32.totalorder %s120, %s136
      %p138 = scmp.eq.s32.totalorder %s23, 0
      %p139 = por %p137, %p138
      %p140 = scmp.le.s32.totalorder 1, %s17
      %p141 = scmp.lt.s32.totalorder %s17, 3
      %p142 = pnand %p140, %p141
      %p143 = pneg %p142
      // Predicated region
      $region9: #{_tds_fc_apply_impl.1} parent=5 // pred_check
        _
      $region10: #{_tds_fc_apply_impl.1} parent=5 // pred_check_branch
        %145 = sbr.rel (%p142) target = $region12
      $region11: #{_tds_fc_apply_impl.1} parent=5 // pred_region
        %s146 = ssub.s32 %s17, 1
        // Predicated region
        $region13: #{_tds_fc_apply_impl.1} parent=11 // pred_check
          %p147 = pneg %p64
        $region14: #{_tds_fc_apply_impl.1} parent=11 // pred_check_branch
          %149 = sbr.rel (%p147) target = $region16
        $region15: #{_tds_fc_apply_impl.1} parent=11 // pred_region
          %s151 = ssub.s32 2048, 2048
          %152 = vsyncadd [#allocation6], %s151
          %s153 = sshll.u32 [#allocation5], 4
          %s154 = int_to_ptr.vmem [resolvable:$true] %s153
          %159 = dma.hbm_to_vmem [thread:$0]  %s1, 2048, %s154, [#allocation6], 128, 128, 8
        $region16: #{_tds_fc_apply_impl.1} parent=11 // pred_fallthru
          _
        // Predicated region
        $region17: #{_tds_fc_apply_impl.1} parent=11 // pred_check
          %p160 = pneg %p85
        $region18: #{_tds_fc_apply_impl.1} parent=11 // pred_check_branch
          %162 = sbr.rel (%p160) target = $region20
        $region19: #{_tds_fc_apply_impl.1} parent=11 // pred_region
          %s164 = ssub.s32 2048, 2048
          %165 = vsyncadd [#allocation6], %s164
          %s166 = sshll.u32 [#allocation7], 4
          %s167 = int_to_ptr.vmem [resolvable:$true] %s166
          %172 = dma.hbm_to_vmem [thread:$0]  %s2, 2048, %s167, [#allocation6], 128, 128, 8
        $region20: #{_tds_fc_apply_impl.1} parent=11 // pred_fallthru
          _
        // Predicated region
        $region21: #{_tds_fc_apply_impl.1} parent=11 // pred_check
          %p173 = pneg %p106
        $region22: #{_tds_fc_apply_impl.1} parent=11 // pred_check_branch
          %175 = sbr.rel (%p173) target = $region24
        $region23: #{_tds_fc_apply_impl.1} parent=11 // pred_region
          _
        $region24: #{_tds_fc_apply_impl.1} parent=11 // pred_fallthru
          _
      $region12: #{_tds_fc_apply_impl.1} parent=5 // pred_fallthru
        _
      %p176 = scmp.lt.s32.totalorder %s17, 2
      // Predicated region
      $region25: #{_tds_fc_apply_impl.1} parent=5 // pred_check
        %p177 = pneg %p176
      $region26: #{_tds_fc_apply_impl.1} parent=5 // pred_check_branch
        %179 = sbr.rel (%p177) target = $region28
      $region27: #{_tds_fc_apply_impl.1} parent=5 // pred_region
        // Predicated region
        $region29: #{_tds_fc_apply_impl.1} parent=27 // pred_check
          %p180 = pneg %p37
        $region30: #{_tds_fc_apply_impl.1} parent=27 // pred_check_branch
          %182 = sbr.rel (%p180) target = $region32
        $region31: #{_tds_fc_apply_impl.1} parent=27 // pred_region
          %s183 = sand.u32 %s27, 1
          %s184 = scalar_lea.sflag [#allocation3], %s183
          %s185 = sand.u32 %s27, 1
          %s186 = smul.addr %s185, 8
          %s187 = scalar_lea.vmem [#allocation2], %s186
          %s189 = ssub.s32 128, 128
          %190 = vsyncadd %s184, %s189
          %s191 = smul.addr %s17, 128
          %s192 = scalar_lea.hbm %s0, %s191
          %s194 = sshll.u32 %s187, 4
          %s195 = int_to_ptr.vmem [resolvable:$true] %s194
          %197 = dma.hbm_to_vmem [thread:$0]  %s192, 128, %s195, %s184
        $region32: #{_tds_fc_apply_impl.1} parent=27 // pred_fallthru
          _
      $region28: #{_tds_fc_apply_impl.1} parent=5 // pred_fallthru
        _
      %p198 = scmp.le.s32.totalorder 1, %s17
      %p199 = scmp.lt.s32.totalorder %s17, 3
      %p200 = pnand %p198, %p199
      %p201 = pneg %p200
      // Predicated region
      $region33: #{_tds_fc_apply_impl.1} parent=5 // pred_check
        _
      $region34: #{_tds_fc_apply_impl.1} parent=5 // pred_check_branch
        %203 = sbr.rel (%p200) target = $region36
      $region35: #{_tds_fc_apply_impl.1} parent=5 // pred_region
        %s204 = ssub.s32 %s17, 1
        %s205 = sand.u32 %s30, 1
        %s206 = scalar_lea.sflag [#allocation3], %s205
        %s207 = sand.u32 %s30, 1
        %s208 = smul.addr %s207, 8
        %s209 = scalar_lea.vmem [#allocation2], %s208
        // Predicated region
        $region37: #{_tds_fc_apply_impl.1} parent=35 // pred_check
          %p210 = pneg %p43
        $region38: #{_tds_fc_apply_impl.1} parent=35 // pred_check_branch
          %212 = sbr.rel (%p210) target = $region40
        $region39: #{_tds_fc_apply_impl.1} parent=35 // pred_region
          %213 = dma.done %s206, 128
        $region40: #{_tds_fc_apply_impl.1} parent=35 // pred_fallthru
          _
        // Predicated region
        $region41: #{_tds_fc_apply_impl.1} parent=35 // pred_check
          %p214 = pneg %p64
        $region42: #{_tds_fc_apply_impl.1} parent=35 // pred_check_branch
          %216 = sbr.rel (%p214) target = $region44
        $region43: #{_tds_fc_apply_impl.1} parent=35 // pred_region
          %217 = dma.done [#allocation6], 2048
        $region44: #{_tds_fc_apply_impl.1} parent=35 // pred_fallthru
          _
        // Predicated region
        $region45: #{_tds_fc_apply_impl.1} parent=35 // pred_check
          %p218 = pneg %p85
        $region46: #{_tds_fc_apply_impl.1} parent=35 // pred_check_branch
          %220 = sbr.rel (%p218) target = $region48
        $region47: #{_tds_fc_apply_impl.1} parent=35 // pred_region
          %221 = dma.done [#allocation6], 2048
        $region48: #{_tds_fc_apply_impl.1} parent=35 // pred_fallthru
          _
        %s222 = sand.u32 %s30, 1
        %s223 = scalar_lea.sflag [#allocation3], %s222
        %s224 = sand.u32 %s30, 1
        %s225 = smul.addr %s224, 8
        %s226 = scalar_lea.vmem [#allocation2], %s225
        %p227 = pneg %p43
        %p228 = pneg %p40
        %p229 = pneg %p64
        %p230 = pneg %p61
        %p231 = pneg %p85
        %p232 = pneg %p82
        %p233 = pneg %p106
        %p234 = pneg %p103
        %p235 = pneg %p132
        %p236 = pneg %p129
        %s237 = sand.u32 %s119, 1
        %s238 = scalar_lea.sflag [#allocation4], %s237
        %s239 = sand.u32 %s119, 1
        %s240 = smul.addr %s239, 8
        %s241 = scalar_lea.vmem [#allocation8], %s240
        %v242 = vld [vmem:[%s209] sm:$0xff]
        %v243 = vld [vmem:[%s3] sm:$0xf]
        %v244 = vld [vmem:[#allocation5] sm:$0xff]
        %v245 = vld [vmem:[#allocation5 + $0x8] sm:$0xff]
        %v246 = vld [vmem:[#allocation5 + $0x10] sm:$0xff]
        %v247 = vld [vmem:[#allocation5 + $0x18] sm:$0xff]
        %v248 = vld [vmem:[#allocation5 + $0x20] sm:$0xff]
        %v249 = vld [vmem:[#allocation5 + $0x28] sm:$0xff]
        %v250 = vld [vmem:[#allocation5 + $0x30] sm:$0xff]
        %v251 = vld [vmem:[#allocation5 + $0x38] sm:$0xff]
        %v252 = vld [vmem:[#allocation5 + $0x40] sm:$0xff]
        %v253 = vld [vmem:[#allocation5 + $0x48] sm:$0xff]
        %v254 = vld [vmem:[#allocation5 + $0x50] sm:$0xff]
        %v255 = vld [vmem:[#allocation5 + $0x58] sm:$0xff]
        %v256 = vld [vmem:[#allocation5 + $0x60] sm:$0xff]
        %v257 = vld [vmem:[#allocation5 + $0x68] sm:$0xff]
        %v258 = vld [vmem:[#allocation5 + $0x70] sm:$0xff]
        %v259 = vld [vmem:[#allocation5 + $0x78] sm:$0xff]
        %v260 = vlaneseq
        %v261 = vshrl.u32 %v260, 7
        %v262 = vsub.s32 0, %v261
        %v263 = vrot.slane %v243, %v262
        %264 = vmatprep.subr.mxu0 0.0
        %265 = vmatpush1.msra.mxu0 %v244
        %266 = vmatprep.subr.mxu0 0.0
        %267 = vmatpush1.msra.mxu0 %v245
        %268 = vmatprep.subr.mxu0 0.0
        %269 = vmatpush1.msra.mxu0 %v246
        %270 = vmatprep.subr.mxu0 0.0
        %271 = vmatpush1.msra.mxu0 %v247
        %272 = vmatprep.subr.mxu0 0.0
        %273 = vmatpush1.msra.mxu0 %v248
        %274 = vmatprep.subr.mxu0 0.0
        %275 = vmatpush1.msra.mxu0 %v249
        %276 = vmatprep.subr.mxu0 0.0
        %277 = vmatpush1.msra.mxu0 %v250
        %278 = vmatprep.subr.mxu0 0.0
        %279 = vmatpush1.msra.mxu0 %v251
        %280 = vmatprep.subr.mxu0 0.0
        %281 = vmatpush1.msra.mxu0 %v252
        %282 = vmatprep.subr.mxu0 0.0
        %283 = vmatpush1.msra.mxu0 %v253
        %284 = vmatprep.subr.mxu0 0.0
        %285 = vmatpush1.msra.mxu0 %v254
        %286 = vmatprep.subr.mxu0 0.0
        %287 = vmatpush1.msra.mxu0 %v255
        %288 = vmatprep.subr.mxu0 0.0
        %289 = vmatpush1.msra.mxu0 %v256
        %290 = vmatprep.subr.mxu0 0.0
        %291 = vmatpush1.msra.mxu0 %v257
        %292 = vmatprep.subr.mxu0 0.0
        %293 = vmatpush1.msra.mxu0 %v258
        %294 = vmatprep.subr.mxu0 0.0
        %295 = vmatpush1.msra.mxu0 %v259
        %296 = vmatprep.subr.mxu0 0.0
        %297 = vmatpush1.msra.mxu0 0.0
        %298 = vmatprep.subr.mxu0 0.0
        %299 = vmatpush1.msra.mxu0 0.0
        %300 = vmatprep.subr.mxu0 0.0
        %301 = vmatpush1.msra.mxu0 0.0
        %302 = vmatprep.subr.mxu0 0.0
        %303 = vmatpush1.msra.mxu0 0.0
        %304 = vmatprep.subr.mxu0 0.0
        %305 = vmatpush1.msra.mxu0 0.0
        %306 = vmatprep.subr.mxu0 0.0
        %307 = vmatpush1.msra.mxu0 0.0
        %308 = vmatprep.subr.mxu0 0.0
        %309 = vmatpush1.msra.mxu0 0.0
        %310 = vmatprep.subr.mxu0 0.0
        %311 = vmatpush1.msra.mxu0 0.0
        %312 = vmatprep.subr.mxu0 0.0
        %313 = vmatpush1.msra.mxu0 0.0
        %314 = vmatprep.subr.mxu0 0.0
        %315 = vmatpush1.msra.mxu0 0.0
        %316 = vmatprep.subr.mxu0 0.0
        %317 = vmatpush1.msra.mxu0 0.0
        %318 = vmatprep.subr.mxu0 0.0
        %319 = vmatpush1.msra.mxu0 0.0
        %320 = vmatprep.subr.mxu0 0.0
        %321 = vmatpush1.msra.mxu0 0.0
        %322 = vmatprep.subr.mxu0 0.0
        %323 = vmatpush1.msra.mxu0 0.0
        %324 = vmatprep.subr.mxu0 0.0
        %325 = vmatpush1.msra.mxu0 0.0
        %326 = vmatprep.subr.mxu0 0.0
        %327 = vmatpush1.msra.mxu0 0.0
        %328 = vmatprep.mubr.f32.mxu0 0.0
        %329 = vmatmul.mubr.f32.gmra.mrb[0].mxu0 %v242
        %v330 = vpop.f32.mrb[0].mxu0
        %v331 = vadd.f32 %v263, %v330
        %v332 = vpop.f32.mrb[0].mxu0
        %333 = vdwg.mxu0
        %v334 = vmax.f32 %v331, 0.0
        %v335 = vld [vmem:[#allocation7] sm:$0xff]
        %v336 = vld [vmem:[#allocation7 + $0x8] sm:$0xff]
        %v337 = vld [vmem:[#allocation7 + $0x10] sm:$0xff]
        %v338 = vld [vmem:[#allocation7 + $0x18] sm:$0xff]
        %v339 = vld [vmem:[#allocation7 + $0x20] sm:$0xff]
        %v340 = vld [vmem:[#allocation7 + $0x28] sm:$0xff]
        %v341 = vld [vmem:[#allocation7 + $0x30] sm:$0xff]
        %v342 = vld [vmem:[#allocation7 + $0x38] sm:$0xff]
        %v343 = vld [vmem:[#allocation7 + $0x40] sm:$0xff]
        %v344 = vld [vmem:[#allocation7 + $0x48] sm:$0xff]
        %v345 = vld [vmem:[#allocation7 + $0x50] sm:$0xff]
        %v346 = vld [vmem:[#allocation7 + $0x58] sm:$0xff]
        %v347 = vld [vmem:[#allocation7 + $0x60] sm:$0xff]
        %v348 = vld [vmem:[#allocation7 + $0x68] sm:$0xff]
        %v349 = vld [vmem:[#allocation7 + $0x70] sm:$0xff]
        %v350 = vld [vmem:[#allocation7 + $0x78] sm:$0xff]
        %v351 = vlaneseq
        %v352 = vshrl.u32 %v351, 7
        %v353 = vsub.s32 1, %v352
        %v354 = vrot.slane %v243, %v353
        %355 = vmatprep.subr.mxu0 0.0
        %356 = vmatpush1.msra.mxu0 %v335
        %357 = vmatprep.subr.mxu0 0.0
        %358 = vmatpush1.msra.mxu0 %v336
        %359 = vmatprep.subr.mxu0 0.0
        %360 = vmatpush1.msra.mxu0 %v337
        %361 = vmatprep.subr.mxu0 0.0
        %362 = vmatpush1.msra.mxu0 %v338
        %363 = vmatprep.subr.mxu0 0.0
        %364 = vmatpush1.msra.mxu0 %v339
        %365 = vmatprep.subr.mxu0 0.0
        %366 = vmatpush1.msra.mxu0 %v340
        %367 = vmatprep.subr.mxu0 0.0
        %368 = vmatpush1.msra.mxu0 %v341
        %369 = vmatprep.subr.mxu0 0.0
        %370 = vmatpush1.msra.mxu0 %v342
        %371 = vmatprep.subr.mxu0 0.0
        %372 = vmatpush1.msra.mxu0 %v343
        %373 = vmatprep.subr.mxu0 0.0
        %374 = vmatpush1.msra.mxu0 %v344
        %375 = vmatprep.subr.mxu0 0.0
        %376 = vmatpush1.msra.mxu0 %v345
        %377 = vmatprep.subr.mxu0 0.0
        %378 = vmatpush1.msra.mxu0 %v346
        %379 = vmatprep.subr.mxu0 0.0
        %380 = vmatpush1.msra.mxu0 %v347
        %381 = vmatprep.subr.mxu0 0.0
        %382 = vmatpush1.msra.mxu0 %v348
        %383 = vmatprep.subr.mxu0 0.0
        %384 = vmatpush1.msra.mxu0 %v349
        %385 = vmatprep.subr.mxu0 0.0
        %386 = vmatpush1.msra.mxu0 %v350
        %387 = vmatprep.subr.mxu0 0.0
        %388 = vmatpush1.msra.mxu0 0.0
        %389 = vmatprep.subr.mxu0 0.0
        %390 = vmatpush1.msra.mxu0 0.0
        %391 = vmatprep.subr.mxu0 0.0
        %392 = vmatpush1.msra.mxu0 0.0
        %393 = vmatprep.subr.mxu0 0.0
        %394 = vmatpush1.msra.mxu0 0.0
        %395 = vmatprep.subr.mxu0 0.0
        %396 = vmatpush1.msra.mxu0 0.0
        %397 = vmatprep.subr.mxu0 0.0
        %398 = vmatpush1.msra.mxu0 0.0
        %399 = vmatprep.subr.mxu0 0.0
        %400 = vmatpush1.msra.mxu0 0.0
        %401 = vmatprep.subr.mxu0 0.0
        %402 = vmatpush1.msra.mxu0 0.0
        %403 = vmatprep.subr.mxu0 0.0
        %404 = vmatpush1.msra.mxu0 0.0
        %405 = vmatprep.subr.mxu0 0.0
        %406 = vmatpush1.msra.mxu0 0.0
        %407 = vmatprep.subr.mxu0 0.0
        %408 = vmatpush1.msra.mxu0 0.0
        %409 = vmatprep.subr.mxu0 0.0
        %410 = vmatpush1.msra.mxu0 0.0
        %411 = vmatprep.subr.mxu0 0.0
        %412 = vmatpush1.msra.mxu0 0.0
        %413 = vmatprep.subr.mxu0 0.0
        %414 = vmatpush1.msra.mxu0 0.0
        %415 = vmatprep.subr.mxu0 0.0
        %416 = vmatpush1.msra.mxu0 0.0
        %417 = vmatprep.subr.mxu0 0.0
        %418 = vmatpush1.msra.mxu0 0.0
        %419 = vmatprep.mubr.f32.mxu0 0.0
        %420 = vmatmul.mubr.f32.gmra.mrb[0].mxu0 %v334
        %v421 = vpop.f32.mrb[0].mxu0
        %v422 = vadd.f32 %v354, %v421
        %v423 = vpop.f32.mrb[0].mxu0
        %424 = vdwg.mxu0
        %v425 = vadd.f32 %v422, %v242
        %426 = vadd.xlane.f32.xlu0 %v425
        %v427 = vpop.xlane.xlu0 %426
        %v428 = vmul.f32 %v427, 0.0078125
        %v429 = vsub.f32 %v425, %v428
        %v430 = vmul.f32 %v429, %v429
        %431 = vadd.xlane.f32.xlu0 %v430
        %v432 = vpop.xlane.xlu0 %431
        %v433 = vmul.f32 %v432, 0.0078125
        %v434 = vadd.f32 %v433, 1e-05
        %v435 = vrsqrt.pop %v434
        %v436 = vmul.f32 %v429, %v435
        %v437 = vlaneseq
        %v438 = vshrl.u32 %v437, 7
        %v439 = vsub.s32 2, %v438
        %v440 = vrot.slane %v243, %v439
        %v441 = vmul.f32 %v436, %v440
        %v442 = vlaneseq
        %v443 = vshrl.u32 %v442, 7
        %v444 = vsub.s32 3, %v443
        %v445 = vrot.slane %v243, %v444
        %v446 = vadd.f32 %v441, %v445
        %447 = vst [vmem:[%s241] sm:$0xff] %v446
        %s448 = sand.u32 %s119, 1
        %s449 = scalar_lea.sflag [#allocation4], %s448
        %s450 = sand.u32 %s119, 1
        %s451 = smul.addr %s450, 8
        %s452 = scalar_lea.vmem [#allocation8], %s451
        // Predicated region
        $region49: #{_tds_fc_apply_impl.1} parent=35 // pred_check
          %p453 = pneg %p129
        $region50: #{_tds_fc_apply_impl.1} parent=35 // pred_check_branch
          %455 = sbr.rel (%p453) target = $region52
        $region51: #{_tds_fc_apply_impl.1} parent=35 // pred_region
          %s457 = ssub.s32 128, 128
          %458 = vsyncadd %s449, %s457
          %s459 = smul.addr %s22, 128
          %s460 = scalar_lea.hbm %s4, %s459
          %s462 = sshll.u32 %s452, 4
          %s463 = int_to_ptr.vmem [resolvable:$true] %s462
          %465 = dma.vmem_to_hbm [thread:$0]  %s463, 128, %s460, %s449
        $region52: #{_tds_fc_apply_impl.1} parent=35 // pred_fallthru
          _
      $region36: #{_tds_fc_apply_impl.1} parent=5 // pred_fallthru
        _
      %p466 = scmp.le.s32.totalorder 2, %s17
      // Predicated region
      $region53: #{_tds_fc_apply_impl.1} parent=5 // pred_check
        %p467 = pneg %p466
      $region54: #{_tds_fc_apply_impl.1} parent=5 // pred_check_branch
        %469 = sbr.rel (%p467) target = $region56
      $region55: #{_tds_fc_apply_impl.1} parent=5 // pred_region
        %s470 = ssub.s32 %s17, 2
        // Predicated region
        $region57: #{_tds_fc_apply_impl.1} parent=55 // pred_check
          %p471 = pneg %p135
        $region58: #{_tds_fc_apply_impl.1} parent=55 // pred_check_branch
          %473 = sbr.rel (%p471) target = $region60
        $region59: #{_tds_fc_apply_impl.1} parent=55 // pred_region
          %s474 = sand.u32 %s120, 1
          %s475 = scalar_lea.sflag [#allocation4], %s474
          %s476 = sand.u32 %s120, 1
          %s477 = smul.addr %s476, 8
          %s478 = scalar_lea.vmem [#allocation8], %s477
          %479 = dma.done %s475, 128
        $region60: #{_tds_fc_apply_impl.1} parent=55 // pred_fallthru
          _
      $region56: #{_tds_fc_apply_impl.1} parent=5 // pred_fallthru
        _
    $region6: #{_tds_fc_apply_impl.1} parent=1 // loop_footer
      %s21 = sadd.s32 1, %s17
    $region7: #{_tds_fc_apply_impl.1} parent=1 // loop_footer_branch
      %16 = sbr.rel target = $region3
    $region8: #{_tds_fc_apply_impl.1} parent=1 // loop_exit
      _
    %480 = vsyncpa [#allocation3], 1
    %s481 = scalar_lea.sflag [#allocation3], 1
    %482 = vsyncpa %s481, 1
    %483 = vsyncpa [#allocation6], 1
    %484 = vsyncpa [#allocation4], 1
    %s485 = scalar_lea.sflag [#allocation4], 1
    %486 = vsyncpa %s485, 1

</llo_original>
